<compile_context>
chip_gen: v5e
topology: v5e:2x2
jax: 0.10.0
libtpu: 0.0.40
codegen_flags: <defaults>
</compile_context>

<pallas_src>
import math

import jax
import jax.numpy as jnp
import numpy as np
from jax.experimental import pallas as pl
from jax.experimental.pallas import tpu as pltpu


def _acos01(x):
    # arccos(x) for x in [0, 1] via Abramowitz & Stegun 4.4.45 (|err| <= 5e-5): sqrt + degree-3
    # polynomial only. bf16 matmul operands carry ~3 significant digits, so the previous degree-7
    # minimax (~2x the VALU ops on a (tile_n, 128) f32 tile) bought nothing.
    p = jnp.float32(-0.0187293)
    p = p * x + jnp.float32(0.0742610)
    p = p * x + jnp.float32(-0.2121144)
    p = p * x + jnp.float32(1.5707288)
    return jnp.sqrt(1.0 - x) * p


def _clip_loss_kernel(iii_ref, emb_t_ref, w_ref, loss_ref):
    t = pl.program_id(1)  # reduction axis over cutout tiles (within one parallel split)

    @pl.when(t == 0)
    def _init():
        loss_ref[...] = jnp.zeros_like(loss_ref)

    # Deferred F.normalize: compute the per-row rsqrt scale in f32 (1e-24 clamp) but apply it to the
    # narrow (tile_n, P_pad) matmul OUTPUT instead of the wide (tile_n, D) operand. Mathematically
    # identical (f32 accumulation); assumes CLIP-scale (O(1)) inputs for the bf16 matmul.
    x_raw = iii_ref[...]                                          # (TN, D), native dtype (bf16)
    x_f32 = x_raw.astype(jnp.float32)
    sumsq = jnp.sum(x_f32 * x_f32, axis=-1, keepdims=True)        # (TN, 1) f32
    inv_norm = jax.lax.rsqrt(jnp.maximum(sumsq, 1e-24))           # rides the EUP slot

    # Raw similarities on the MXU: bf16 x bf16 -> f32 accumulate. RHS is pre-transposed (D, P_pad),
    # i.e. already MXU-native (K, N) with the prompt axis lane-dense -> no stationary-operand transpose.
    x_mm = x_raw if x_raw.dtype == emb_t_ref.dtype else x_raw.astype(emb_t_ref.dtype)
    raw = jax.lax.dot_general(
        x_mm, emb_t_ref[...], (((1,), (0,)), ((), ())),
        preferred_element_type=jnp.float32)                       # (TN, P_pad)
    dot = raw * inv_norm                                          # cosine similarities

    # 2 * arcsin(||a-b||/2)^2  ==  0.5 * arccos(dot)^2   (a, b unit vectors)
    a = jnp.minimum(jnp.abs(dot), 1.0)
    acos_abs = _acos01(a)
    acos = jnp.where(dot >= 0.0, acos_abs, jnp.float32(math.pi) - acos_abs)
    dists = 0.5 * acos * acos
    # TODO(synk): on v6e/v7x (bf16-native VALU) this epilogue could run in bf16 with only the axis-0
    # accumulation kept in f32; kept f32 here so the same kernel stays exact-enough on v5e.

    # Accumulate directly into the resident output block (accumulator-in-output).
    loss_ref[...] += jnp.sum(dists, axis=0, keepdims=True)

    @pl.when(t == pl.num_programs(1) - 1)
    def _finalize():
        # w_eff already folds |w|*sign(w) == w, the perceptor weight, and the 1/N of the mean.
        loss_ref[...] = loss_ref[...] * w_ref[...]


def _num_tensorcores():
    """2 on v7x-class chips (2 TensorCores per chip), 1 on v5e/v6e."""
    try:
        kind = jax.devices()[0].device_kind.lower()
    except Exception:
        return 1
    return 2 if ("v7" in kind or "7x" in kind) else 1


def multi_clip_loss(iii, embeds_normed, prompt_weights, perceptor_weight,
                    *, tile_n=None, parallel_splits=None):
    """Losses for one perceptor: returns (P,) -- one loss per prompt.

    iii is streamed in its native dtype (pass bf16 CLIP embeddings for best DMA efficiency).
    parallel_splits defaults to the TensorCore count: 1 on v5e/v6e (splitting only shrinks the MXU
    M dimension there), 2 on v7x where the leading grid axis is marked CORE_PARALLEL so the cutout
    reduction is actually sharded across both cores.
    """
    n_cuts, d = iii.shape
    n_prompts = embeds_normed.shape[0]
    p_pad = 128  # lane-dense output / MXU-friendly prompt axis
    assert n_prompts <= p_pad, f"at most {p_pad} prompts supported, got {n_prompts}"

    # Sublane packing of the streamed-input block: f32 (8,128), bf16 (16,128), int8/fp8 (32,128).
    sublane = {1: 32, 2: 16, 4: 8}.get(jnp.dtype(iii.dtype).itemsize, 8)

    multi_core = _num_tensorcores() > 1
    if parallel_splits is None:
        parallel_splits = 2 if (multi_core and n_cuts % 2 == 0) else 1
    assert n_cuts % parallel_splits == 0
    cuts_per_split = n_cuts // parallel_splits
    assert cuts_per_split % sublane == 0, "cuts per split must honour sublane packing"

    if tile_n is None:
        # One big MXU-filling tile per split when it fits: a 2048x768 bf16 block double-buffered is
        # ~6 MiB, far under every generation's scoped-VMEM default, and each grid step saved is ~0.35us.
        cap = 2048
        tile_n = cuts_per_split if cuts_per_split <= cap else max(
            t for t in range(sublane, cap + 1, sublane) if cuts_per_split % t == 0)
    assert cuts_per_split % tile_n == 0
    assert tile_n % sublane == 0, "sublane alignment"
    n_steps = cuts_per_split // tile_n

    # Prompt embeddings resident in VMEM, pre-transposed to MXU-native (K=D, N=P_pad) bf16.
    emb_t = jnp.zeros((d, p_pad), jnp.bfloat16).at[:, :n_prompts].set(
        embeds_normed.astype(jnp.bfloat16).T)
    # |w|*sign(w)*perceptor_weight*mean  ==  w*perceptor_weight/N  -> fold it all into one vector.
    w_eff = jnp.zeros((1, p_pad), jnp.float32).at[0, :n_prompts].set(
        jnp.asarray(prompt_weights, jnp.float32)
        * jnp.float32(perceptor_weight) / jnp.float32(n_cuts))

    # Only shard the outer axis across cores when there actually are multiple TensorCores; a plain
    # serial ("arbitrary") loop otherwise. The grid-invariant emb_t/w_eff blocks are tiny (<=200 KB),
    # so their default double-buffering is a VMEM non-issue even on v7x's 64 MiB.
    if parallel_splits > 1 and multi_core:
        dim_sem = (pltpu.CORE_PARALLEL, pltpu.ARBITRARY)
    else:
        dim_sem = ("arbitrary", "arbitrary")

    itemsize = jnp.dtype(iii.dtype).itemsize
    cost = pl.CostEstimate(
        flops=2 * n_cuts * d * p_pad + 2 * n_cuts * d + 12 * n_cuts * p_pad,
        transcendentals=n_cuts * (1 + p_pad),
        bytes_accessed=(n_cuts * d * itemsize + d * p_pad * 2
                        + 4 * p_pad * (1 + parallel_splits)),
    )

    out = pl.pallas_call(
        _clip_loss_kernel,
        out_shape=jax.ShapeDtypeStruct((parallel_splits, p_pad), jnp.float32),
        grid_spec=pltpu.PrefetchScalarGridSpec(
            num_scalar_prefetch=0,
            grid=(parallel_splits, n_steps),
            in_specs=[
                pl.BlockSpec((tile_n, d), lambda s, t: (s * n_steps + t, 0)),  # streamed cutouts
                pl.BlockSpec((d, p_pad), lambda s, t: (0, 0)),                 # prompts (resident)
                pl.BlockSpec((1, p_pad), lambda s, t: (0, 0)),                 # folded weights
            ],
            out_specs=pl.BlockSpec((1, p_pad), lambda s, t: (s, 0)),
        ),
        compiler_params=pltpu.CompilerParams(dimension_semantics=dim_sem),
        cost_estimate=cost,
    )(iii, emb_t, w_eff)

    return jnp.sum(out, axis=0)[:n_prompts]


def multi_clip_loss_ref(iii, embeds_normed, prompt_weights, perceptor_weight):
    """Pure-JAX reference, written exactly like the PyTorch math (sub -> norm -> arcsin)."""
    x = iii.astype(jnp.float32)[:, None, :]                                   # (N, 1, D)
    x = x / jnp.maximum(jnp.linalg.norm(x, axis=2, keepdims=True), 1e-12)
    d = jnp.linalg.norm(x - embeds_normed[None, :, :].astype(jnp.float32), axis=2)  # (N, P)
    dists = 2.0 * jnp.arcsin(d / 2.0) ** 2
    dists = dists * jnp.sign(prompt_weights)[None, :]
    return jnp.abs(prompt_weights) * jnp.mean(dists, axis=0) * perceptor_weight


def _parse_prompt(prompt):
    vals = prompt.rsplit(':', 2)
    vals = vals + ['', '1', '-inf'][len(vals):]
    return vals[0], float(vals[1]), float(vals[2])


if __name__ == "__main__":
    key = jax.random.PRNGKey(0)
    k_img, k_iii, k_txt = jax.random.split(key, 3)

    # Synthetic module config (small shapes).
    clip_models = [("synthetic-clip", 1.0)]                      # one perceptor, weight 1.0
    text_prompt = "an ability icon:1|dark fantasy game art:0.5"
    cutn, batch, channels, side = 16, 2, 3, 16
    embed_dim = 128

    # img as the module's forward would receive it (NCHW); kept for shape fidelity only.
    img = jax.random.uniform(k_img, (batch, channels, side, side), jnp.float32)
    # TODO(synk): MakeCutouts2 random crops, lanczos/bicubic resample, kornia augmentations and the
    # pretrained CLIP encode_image/encode_text have no clean Pallas equivalent; deterministic
    # synthetic embeddings stand in for the perceptor outputs below.
    n_cuts = cutn * batch
    iii_f32 = jax.random.normal(k_iii, (n_cuts, embed_dim), jnp.float32)      # encode_image output
    iii = iii_f32.astype(jnp.bfloat16)                                        # native/bf16 streaming

    # __init__-style prompt parsing + weight normalization (normalize_prompt_weights=True).
    parsed = [_parse_prompt(p.strip()) for p in text_prompt.split('|')]
    wsum = sum(max(w, 0.0) for _, w, _ in parsed)
    weights = jnp.asarray([w / wsum for _, w, _ in parsed], jnp.float32)

    text_embeds = jax.random.normal(k_txt, (len(parsed), embed_dim), jnp.float32)  # encode_text output
    embeds_normed = text_embeds / jnp.maximum(
        jnp.linalg.norm(text_embeds, axis=-1, keepdims=True), 1e-12)

    perceptor_weight = clip_models[0][1]

    ref = multi_clip_loss_ref(iii.astype(jnp.float32), embeds_normed, weights, perceptor_weight)

    # Auto (chip-gated) splits, the explicit single-tile path, and the explicit 2-way split path
    # (CORE_PARALLEL only engages on a multi-TensorCore chip; a plain serial loop elsewhere).
    for splits in (None, 1, 2):
        losses = multi_clip_loss(iii, embeds_normed, weights, perceptor_weight,
                                 parallel_splits=splits)
        losses = jax.block_until_ready(losses)
        if not np.allclose(np.asarray(losses), np.asarray(ref), rtol=1e-2, atol=1e-3):
            raise AssertionError(
                f"mismatch (splits={splits}): pallas={np.asarray(losses)} ref={np.asarray(ref)}")
    print("KERNEL_OK")
</pallas_src>

<mosaic_0001>
module attributes {stable_mosaic.version = 11 : i64} {
  func.func @_clip_loss_kernel(%arg0: i32, %arg1: i32, %arg2: memref<32x128xbf16, #tpu.memory_space<vmem>>, %arg3: memref<128x128xbf16, #tpu.memory_space<vmem>>, %arg4: memref<1x128xf32, #tpu.memory_space<vmem>>, %arg5: memref<1x128xf32, #tpu.memory_space<vmem>>) attributes {dimension_semantics = [#tpu.dimension_semantics<arbitrary>, #tpu.dimension_semantics<arbitrary>], iteration_bounds = array<i64: 1, 1>, scalar_prefetch = 0 : i64, scratch_operands = 0 : i64, tpu.core_type = #tpu.core_type<tc>, window_params = [{transform_indices = @transform_0, window_bounds = array<i64: 32, 128>}, {pipeline_mode = #tpu.pipeline_mode<synchronous>, transform_indices = @transform_1, window_bounds = array<i64: 128, 128>}, {pipeline_mode = #tpu.pipeline_mode<synchronous>, transform_indices = @transform_2, window_bounds = array<i64: 1, 128>}, {transform_indices = @transform_3, window_bounds = array<i64: 1, 128>}]} {
    %c0_i32 = arith.constant 0 : i32
    %0 = arith.cmpi eq, %arg1, %c0_i32 : i32
    %1 = arith.extui %0 : i1 to i32
    %c0_i32_0 = arith.constant 0 : i32
    %2 = arith.cmpi ne, %1, %c0_i32_0 : i32
    scf.if %2 {
      %cst_22 = arith.constant 0.000000e+00 : f32
      %48 = vector.broadcast %cst_22 : f32 to vector<1x128xf32>
      %c0_23 = arith.constant 0 : index
      %c0_24 = arith.constant 0 : index
      %49 = vector.load %arg5[%c0_23, %c0_24] : memref<1x128xf32, #tpu.memory_space<vmem>>, vector<1x128xf32>
      tpu.vector_store %arg5[%c0_23, %c0_24], %48 {strides = array<i32>} : memref<1x128xf32, #tpu.memory_space<vmem>>, vector<1x128xf32>,
    } else {
    }
    %c0 = arith.constant 0 : index
    %c0_1 = arith.constant 0 : index
    %3 = vector.load %arg2[%c0, %c0_1] : memref<32x128xbf16, #tpu.memory_space<vmem>>, vector<32x128xbf16>
    %4 = arith.extf %3 : vector<32x128xbf16> to vector<32x128xf32>
    %5 = arith.mulf %4, %4 : vector<32x128xf32>
    %cst = arith.constant dense<0.000000e+00> : vector<32xf32>
    %6 = vector.multi_reduction <add>, %5, %cst [1] : vector<32x128xf32> to vector<32xf32>
    %7 = vector.shape_cast %6 : vector<32xf32> to vector<32x1xf32>
    %cst_2 = arith.constant 1.000000e-24 : f32
    %8 = vector.broadcast %cst_2 : f32 to vector<32x1xf32>
    %9 = arith.maximumf %7, %8 : vector<32x1xf32>
    %10 = math.rsqrt %9 : vector<32x1xf32>
    %c0_3 = arith.constant 0 : index
    %c0_4 = arith.constant 0 : index
    %11 = vector.load %arg3[%c0_3, %c0_4] : memref<128x128xbf16, #tpu.memory_space<vmem>>, vector<128x128xbf16>
    %cst_5 = arith.constant dense<0.000000e+00> : vector<32x128xf32>
    %12 = tpu.matmul %3, %11, %cst_5 {dimension_numbers = #tpu.dot_dimension_numbers<[1], [0], [0], [1], [0, 0, 1, 1], [], []>} : vector<32x128xbf16>, vector<128x128xbf16>, vector<32x128xf32> -> vector<32x128xf32>
    %13 = vector.broadcast %10 : vector<32x1xf32> to vector<32x128xf32>
    %14 = arith.mulf %12, %13 : vector<32x128xf32>
    %15 = math.absf %14 : vector<32x128xf32>
    %cst_6 = arith.constant 1.000000e+00 : f32
    %16 = vector.broadcast %cst_6 : f32 to vector<32x128xf32>
    %17 = arith.minimumf %15, %16 : vector<32x128xf32>
    %cst_7 = arith.constant -1.872930e-02 : f32
    %18 = vector.broadcast %cst_7 : f32 to vector<32x128xf32>
    %19 = arith.mulf %18, %17 : vector<32x128xf32>
    %cst_8 = arith.constant 7.426100e-02 : f32
    %20 = vector.broadcast %cst_8 : f32 to vector<32x128xf32>
    %21 = arith.addf %19, %20 : vector<32x128xf32>
    %22 = arith.mulf %21, %17 : vector<32x128xf32>
    %cst_9 = arith.constant -0.212114394 : f32
    %23 = vector.broadcast %cst_9 : f32 to vector<32x128xf32>
    %24 = arith.addf %22, %23 : vector<32x128xf32>
    %25 = arith.mulf %24, %17 : vector<32x128xf32>
    %cst_10 = arith.constant 1.57072878 : f32
    %26 = vector.broadcast %cst_10 : f32 to vector<32x128xf32>
    %27 = arith.addf %25, %26 : vector<32x128xf32>
    %cst_11 = arith.constant 1.000000e+00 : f32
    %28 = vector.broadcast %cst_11 : f32 to vector<32x128xf32>
    %29 = arith.subf %28, %17 : vector<32x128xf32>
    %30 = math.sqrt %29 : vector<32x128xf32>
    %31 = arith.mulf %30, %27 : vector<32x128xf32>
    %cst_12 = arith.constant 0.000000e+00 : f32
    %32 = vector.broadcast %cst_12 : f32 to vector<32x128xf32>
    %33 = arith.cmpf oge, %14, %32 : vector<32x128xf32>
    %cst_13 = arith.constant 3.14159274 : f32
    %34 = vector.broadcast %cst_13 : f32 to vector<32x128xf32>
    %35 = arith.subf %34, %31 : vector<32x128xf32>
    %36 = arith.select %33, %31, %35 : vector<32x128xi1>, vector<32x128xf32>
    %cst_14 = arith.constant 5.000000e-01 : f32
    %37 = vector.broadcast %cst_14 : f32 to vector<32x128xf32>
    %38 = arith.mulf %37, %36 : vector<32x128xf32>
    %39 = arith.mulf %38, %36 : vector<32x128xf32>
    %c0_15 = arith.constant 0 : index
    %c0_16 = arith.constant 0 : index
    %40 = vector.load %arg5[%c0_15, %c0_16] : memref<1x128xf32, #tpu.memory_space<vmem>>, vector<1x128xf32>
    %cst_17 = arith.constant dense<0.000000e+00> : vector<128xf32>
    %41 = vector.multi_reduction <add>, %39, %cst_17 [0] : vector<32x128xf32> to vector<128xf32>
    %42 = vector.shape_cast %41 : vector<128xf32> to vector<1x128xf32>
    %43 = arith.addf %40, %42 : vector<1x128xf32>
    %c0_18 = arith.constant 0 : index
    %c0_19 = arith.constant 0 : index
    %44 = vector.load %arg5[%c0_18, %c0_19] : memref<1x128xf32, #tpu.memory_space<vmem>>, vector<1x128xf32>
    tpu.vector_store %arg5[%c0_18, %c0_19], %43 {strides = array<i32>} : memref<1x128xf32, #tpu.memory_space<vmem>>, vector<1x128xf32>,
    %c0_i32_20 = arith.constant 0 : i32
    %45 = arith.cmpi eq, %arg1, %c0_i32_20 : i32
    %46 = arith.extui %45 : i1 to i32
    %c0_i32_21 = arith.constant 0 : i32
    %47 = arith.cmpi ne, %46, %c0_i32_21 : i32
    scf.if %47 {
      %c0_22 = arith.constant 0 : index
      %c0_23 = arith.constant 0 : index
      %48 = vector.load %arg5[%c0_22, %c0_23] : memref<1x128xf32, #tpu.memory_space<vmem>>, vector<1x128xf32>
      %c0_24 = arith.constant 0 : index
      %c0_25 = arith.constant 0 : index
      %49 = vector.load %arg4[%c0_24, %c0_25] : memref<1x128xf32, #tpu.memory_space<vmem>>, vector<1x128xf32>
      %50 = arith.mulf %48, %49 : vector<1x128xf32>
      %c0_26 = arith.constant 0 : index
      %c0_27 = arith.constant 0 : index
      %51 = vector.load %arg5[%c0_26, %c0_27] : memref<1x128xf32, #tpu.memory_space<vmem>>, vector<1x128xf32>
      tpu.vector_store %arg5[%c0_26, %c0_27], %50 {strides = array<i32>} : memref<1x128xf32, #tpu.memory_space<vmem>>, vector<1x128xf32>,
    } else {
    }
    return
  }
  func.func @transform_0(%arg0: i32, %arg1: i32) -> (i32, i32) {
    %c1_i32 = arith.constant 1 : i32
    %0 = arith.muli %arg0, %c1_i32 : i32
    %1 = arith.addi %0, %arg1 : i32
    %c0_i32 = arith.constant 0 : i32
    %c0_i32_0 = arith.constant 0 : i32
    return %1, %c0_i32 : i32, i32
  }
  func.func @transform_1(%arg0: i32, %arg1: i32) -> (i32, i32) {
    %c0_i32 = arith.constant 0 : i32
    %c0_i32_0 = arith.constant 0 : i32
    %c0_i32_1 = arith.constant 0 : i32
    return %c0_i32, %c0_i32_0 : i32, i32
  }
  func.func @transform_2(%arg0: i32, %arg1: i32) -> (i32, i32) {
    %c0_i32 = arith.constant 0 : i32
    %c0_i32_0 = arith.constant 0 : i32
    %c0_i32_1 = arith.constant 0 : i32
    return %c0_i32, %c0_i32_0 : i32, i32
  }
  func.func @transform_3(%arg0: i32, %arg1: i32) -> (i32, i32) {
    %c0_i32 = arith.constant 0 : i32
    %c0_i32_0 = arith.constant 0 : i32
    return %arg0, %c0_i32 : i32, i32
  }
}

</mosaic_0001>

<llo_original>
// kernel: tpu_custom_call.1
$region0: #{tpu_custom_call.1}
  #allocation0 [shape = 'u32[]', space=smem, size = 0x4, offset = 0x4, fixed_abs, tag = 'smem constant byte address 0x4 - core index']
  #allocation1 [shape = 'u32[72,128]{1,0:T(1,128)}', space=vmem, size = 0x9000, scoped, tag = 'internal scratch']
  %s0 = inlined_call_operand.hbm [shape: bf16[32,128], index: 0, kind: input, shape index: {}]
  %s1 = inlined_call_operand.hbm [shape: bf16[128,128], index: 1, kind: input, shape index: {}]
  %s2 = inlined_call_operand.vmem [shape: f32[1,128], index: 2, kind: input, shape index: {}]
  %s3 = inlined_call_operand.hbm [shape: f32[1,128], index: 3, kind: output, shape index: {}]
  %s4 = sld [smem:[#allocation0]]
  $region38: #{tpu_custom_call.1} parent=0
    _
  %s6 = ssub.s32 1, %s4
  %s7 = scalar_select 0, %s6, %s4
  $region1: #{tpu_custom_call.1} parent=0
    #allocation2 [shape = 'u8[8192]{0}', space=vmem, size = 0x2000, scoped, tag = 'input window, operand 0, single buffered']
    #allocation3 [shape = 's32[1]{0}', space=sflag, size = 0x4, scoped, tag = 'scoped memory for tpu_custom_call.1']
    #allocation4 [shape = 's32[1]{0}', space=sflag, size = 0x4, scoped, tag = 'scoped memory for tpu_custom_call.1']
    #allocation5 [shape = 'u8[32768]{0}', space=vmem, size = 0x8000, scoped, tag = 'input window, operand 1, single buffered']
    #allocation6 [shape = 's32[1]{0}', space=sflag, size = 0x4, scoped, tag = 'scoped memory for tpu_custom_call.1']
    #allocation7 [shape = 'u8[512]{0}', space=vmem, size = 0x400, scoped, tag = 'output window, operand 0, single buffered']
    %8 = vsyncpa [#allocation3], 0
    %9 = vsyncpa [#allocation6], 0
    %10 = vsyncpa [#allocation4], 0
    // Predicated region
    $region2: #{tpu_custom_call.1} parent=1 // pred_check
      _
    $region3: #{tpu_custom_call.1} parent=1 // pred_check_branch
      %12 = sbr.rel (0) target = $region5
    $region4: #{tpu_custom_call.1} parent=1 // pred_region
      %s13 = sadd.s32 0, 0
      %s14 = smul.u32 4, %s13
      %16 = vsyncadd [#allocation3], 0
      %s17 = smul.addr %s14, 4
      %s18 = scalar_lea.hbm %s0, %s17
      %s19 = sshll.u32 %s18, 4
      %s20 = int_to_ptr.hbm [resolvable:$true] %s19
      %s21 = sshll.u32 [#allocation2], 4
      %s22 = int_to_ptr.vmem [resolvable:$true] %s21
      %27 = dma.hbm_to_vmem [thread:$0]  %s20, 256, %s22, [#allocation3], 64, 64, 4
    $region5: #{tpu_custom_call.1} parent=1 // pred_fallthru
      _
    // Predicated region
    $region6: #{tpu_custom_call.1} parent=1 // pred_check
      _
    $region7: #{tpu_custom_call.1} parent=1 // pred_check_branch
      %29 = sbr.rel (0) target = $region9
    $region8: #{tpu_custom_call.1} parent=1 // pred_region
      %31 = vsyncadd [#allocation6], 0
      %s32 = sshll.u32 %s1, 4
      %s33 = int_to_ptr.hbm [resolvable:$true] %s32
      %s34 = sshll.u32 [#allocation5], 4
      %s35 = int_to_ptr.vmem [resolvable:$true] %s34
      %40 = dma.hbm_to_vmem [thread:$0]  %s33, 1024, %s35, [#allocation6], 64, 64, 4
    $region9: #{tpu_custom_call.1} parent=1 // pred_fallthru
      _
    // Predicated region
    $region10: #{tpu_custom_call.1} parent=1 // pred_check
      _
    $region11: #{tpu_custom_call.1} parent=1 // pred_check_branch
      %42 = sbr.rel (0) target = $region13
    $region12: #{tpu_custom_call.1} parent=1 // pred_region
      _
    $region13: #{tpu_custom_call.1} parent=1 // pred_fallthru
      _
    // Predicated region
    $region14: #{tpu_custom_call.1} parent=1 // pred_check
      _
    $region15: #{tpu_custom_call.1} parent=1 // pred_check_branch
      %44 = sbr.rel (0) target = $region17
    $region16: #{tpu_custom_call.1} parent=1 // pred_region
      %46 = dma.done [#allocation3], 256
    $region17: #{tpu_custom_call.1} parent=1 // pred_fallthru
      _
    // Predicated region
    $region18: #{tpu_custom_call.1} parent=1 // pred_check
      _
    $region19: #{tpu_custom_call.1} parent=1 // pred_check_branch
      %48 = sbr.rel (0) target = $region21
    $region20: #{tpu_custom_call.1} parent=1 // pred_region
      %50 = dma.done [#allocation6], 1024
    $region21: #{tpu_custom_call.1} parent=1 // pred_fallthru
      _
    %s51 = sadd.s32 0, 0
    %s52 = smul.u32 4, %s51
    %p53 = scmp.eq.s32.totalorder 0, 0
    // Predicated region
    $region22: #{tpu_custom_call.1} parent=1 // pred_check
      %p54 = pneg %p53
    $region23: #{tpu_custom_call.1} parent=1 // pred_check_branch
      %56 = sbr.rel (%p54) target = $region25
    $region24: #{tpu_custom_call.1} parent=1 // pred_region
      %57 = vst [vmem:[#allocation7] sm:$0x1] 0.0
    $region25: #{tpu_custom_call.1} parent=1 // pred_fallthru
      _
    %v58 = vld [vmem:[#allocation2] sm:$0xf]
    %v59 = vld [vmem:[#allocation2 + $0x4] sm:$0xf]
    %v60 = vld [vmem:[#allocation2 + $0x8] sm:$0xf]
    %v61 = vld [vmem:[#allocation2 + $0xc] sm:$0xf]
    %v62 = vunpack.c.l.bf16 %v58
    %v63 = vunpack.c.l.bf16 %v59
    %v64 = vunpack.c.l.bf16 %v60
    %v65 = vunpack.c.l.bf16 %v61
    %v66 = vmul.f32 %v62, %v62
    %v67 = vmul.f32 %v63, %v63
    %v68 = vmul.f32 %v64, %v64
    %v69 = vmul.f32 %v65, %v65
    %70 = vadd.xlane.f32.xlu0 %v66
    %v71 = vpop.xlane.xlu0 %70
    %72 = vadd.xlane.f32.xlu0 %v67
    %v73 = vpop.xlane.xlu0 %72
    %74 = vadd.xlane.f32.xlu0 %v68
    %v75 = vpop.xlane.xlu0 %74
    %76 = vadd.xlane.f32.xlu0 %v69
    %v77 = vpop.xlane.xlu0 %76
    %v78 = vmax.f32 %v71, 1e-24
    %v79 = vmax.f32 %v73, 1e-24
    %v80 = vmax.f32 %v75, 1e-24
    %v81 = vmax.f32 %v77, 1e-24
    %v82 = vrsqrt.pop %v78
    %v83 = vmul.f32 %v82, %v78
    %v84 = vmul.f32 %v83, %v82
    %v85 = vmul.f32 0.5, %v84
    %v86 = vsub.f32 1.5, %v85
    %v87 = vmul.f32 %v82, %v86
    %vm88 = vweird.f32 %v78
    %vm89 = vweird.f32 %v82
    %vm90 = vmor %vm88, %vm89
    %v91 = vsel %vm90, %v82, %v87
    %v92 = vrsqrt.pop %v79
    %v93 = vmul.f32 %v92, %v79
    %v94 = vmul.f32 %v93, %v92
    %v95 = vmul.f32 0.5, %v94
    %v96 = vsub.f32 1.5, %v95
    %v97 = vmul.f32 %v92, %v96
    %vm98 = vweird.f32 %v79
    %vm99 = vweird.f32 %v92
    %vm100 = vmor %vm98, %vm99
    %v101 = vsel %vm100, %v92, %v97
    %v102 = vrsqrt.pop %v80
    %v103 = vmul.f32 %v102, %v80
    %v104 = vmul.f32 %v103, %v102
    %v105 = vmul.f32 0.5, %v104
    %v106 = vsub.f32 1.5, %v105
    %v107 = vmul.f32 %v102, %v106
    %vm108 = vweird.f32 %v80
    %vm109 = vweird.f32 %v102
    %vm110 = vmor %vm108, %vm109
    %v111 = vsel %vm110, %v102, %v107
    %v112 = vrsqrt.pop %v81
    %v113 = vmul.f32 %v112, %v81
    %v114 = vmul.f32 %v113, %v112
    %v115 = vmul.f32 0.5, %v114
    %v116 = vsub.f32 1.5, %v115
    %v117 = vmul.f32 %v112, %v116
    %vm118 = vweird.f32 %v81
    %vm119 = vweird.f32 %v112
    %vm120 = vmor %vm118, %vm119
    %v121 = vsel %vm120, %v112, %v117
    %v122 = vld [vmem:[#allocation5] sm:$0xf]
    %v123 = vld [vmem:[#allocation5 + $0x4] sm:$0xf]
    %v124 = vld [vmem:[#allocation5 + $0x8] sm:$0xf]
    %v125 = vld [vmem:[#allocation5 + $0xc] sm:$0xf]
    %v126 = vld [vmem:[#allocation5 + $0x10] sm:$0xf]
    %v127 = vld [vmem:[#allocation5 + $0x14] sm:$0xf]
    %v128 = vld [vmem:[#allocation5 + $0x18] sm:$0xf]
    %v129 = vld [vmem:[#allocation5 + $0x1c] sm:$0xf]
    %v130 = vld [vmem:[#allocation5 + $0x20] sm:$0xf]
    %v131 = vld [vmem:[#allocation5 + $0x24] sm:$0xf]
    %v132 = vld [vmem:[#allocation5 + $0x28] sm:$0xf]
    %v133 = vld [vmem:[#allocation5 + $0x2c] sm:$0xf]
    %v134 = vld [vmem:[#allocation5 + $0x30] sm:$0xf]
    %v135 = vld [vmem:[#allocation5 + $0x34] sm:$0xf]
    %v136 = vld [vmem:[#allocation5 + $0x38] sm:$0xf]
    %v137 = vld [vmem:[#allocation5 + $0x3c] sm:$0xf]
    %v142 = vunpack.c.l.b16 %v58
    %v143 = vunpack.c.l.b16 %v59
    %v144 = vunpack.c.l.b16 %v60
    %v145 = vunpack.c.l.b16 %v61
    %v146 = vpack.c.b16 %v143, %v142
    %v147 = vpack.c.b16 %v145, %v144
    %v166 = vunpack.c.l.b16 %v122
    %v167 = vunpack.c.l.b16 %v123
    %v168 = vunpack.c.l.b16 %v124
    %v169 = vunpack.c.l.b16 %v125
    %v170 = vunpack.c.l.b16 %v126
    %v171 = vunpack.c.l.b16 %v127
    %v172 = vunpack.c.l.b16 %v128
    %v173 = vunpack.c.l.b16 %v129
    %v174 = vunpack.c.l.b16 %v130
    %v175 = vunpack.c.l.b16 %v131
    %v176 = vunpack.c.l.b16 %v132
    %v177 = vunpack.c.l.b16 %v133
    %v178 = vunpack.c.l.b16 %v134
    %v179 = vunpack.c.l.b16 %v135
    %v180 = vunpack.c.l.b16 %v136
    %v181 = vunpack.c.l.b16 %v137
    %v182 = vpack.c.b16 %v167, %v166
    %v183 = vpack.c.b16 %v169, %v168
    %v184 = vpack.c.b16 %v171, %v170
    %v185 = vpack.c.b16 %v173, %v172
    %v186 = vpack.c.b16 %v175, %v174
    %v187 = vpack.c.b16 %v177, %v176
    %v188 = vpack.c.b16 %v179, %v178
    %v189 = vpack.c.b16 %v181, %v180
    %198 = vmatpush.bf16.msra.mxu0 %v189
    %199 = vmatpush.bf16.msra.mxu0 %v188
    %200 = vmatpush.bf16.msra.mxu0 %v187
    %201 = vmatpush.bf16.msra.mxu0 %v186
    %202 = vmatpush.bf16.msra.mxu0 %v185
    %203 = vmatpush.bf16.msra.mxu0 %v184
    %204 = vmatpush.bf16.msra.mxu0 %v183
    %205 = vmatpush.bf16.msra.mxu0 %v182
    %206 = vmatmul.bf16.gmra.mxu0 %v146
    %v207 = vpop.f32.mrf.mxu0
    %v208 = vadd.f32 0.0, %v207
    %v209 = vpop.f32.mrf.mxu0
    %v210 = vadd.f32 0.0, %v209
    %211 = vmatmul.bf16.gmra.mxu0 %v147
    %v212 = vpop.f32.mrf.mxu0
    %v213 = vadd.f32 0.0, %v212
    %v214 = vpop.f32.mrf.mxu0
    %v215 = vadd.f32 0.0, %v214
    %216 = vdwg.mxu0
    %v217 = vmul.f32 %v208, %v91
    %v218 = vmul.f32 %v210, %v101
    %v219 = vmul.f32 %v213, %v111
    %v220 = vmul.f32 %v215, %v121
    %v221 = vand.u32 2147483647, %v217
    %v222 = vand.u32 2147483647, %v218
    %v223 = vand.u32 2147483647, %v219
    %v224 = vand.u32 2147483647, %v220
    %v225 = vmin.f32 %v221, 1.0
    %v226 = vmin.f32 %v222, 1.0
    %v227 = vmin.f32 %v223, 1.0
    %v228 = vmin.f32 %v224, 1.0
    %v229 = vmul.f32 %v225, -0.0187293
    %v230 = vmul.f32 %v226, -0.0187293
    %v231 = vmul.f32 %v227, -0.0187293
    %v232 = vmul.f32 %v228, -0.0187293
    %v233 = vadd.f32 %v229, 0.074261
    %v234 = vadd.f32 %v230, 0.074261
    %v235 = vadd.f32 %v231, 0.074261
    %v236 = vadd.f32 %v232, 0.074261
    %v237 = vmul.f32 %v233, %v225
    %v238 = vmul.f32 %v234, %v226
    %v239 = vmul.f32 %v235, %v227
    %v240 = vmul.f32 %v236, %v228
    %v241 = vadd.f32 %v237, -0.2121144
    %v242 = vadd.f32 %v238, -0.2121144
    %v243 = vadd.f32 %v239, -0.2121144
    %v244 = vadd.f32 %v240, -0.2121144
    %v245 = vmul.f32 %v241, %v225
    %v246 = vmul.f32 %v242, %v226
    %v247 = vmul.f32 %v243, %v227
    %v248 = vmul.f32 %v244, %v228
    %v249 = vadd.f32 %v245, 1.5707288
    %v250 = vadd.f32 %v246, 1.5707288
    %v251 = vadd.f32 %v247, 1.5707288
    %v252 = vadd.f32 %v248, 1.5707288
    %v253 = vsub.f32 1.0, %v225
    %v254 = vsub.f32 1.0, %v226
    %v255 = vsub.f32 1.0, %v227
    %v256 = vsub.f32 1.0, %v228
    %v257 = vrsqrt.pop %v253
    %v258 = vmul.f32 %v257, %v253
    %v259 = vmul.f32 %v258, %v257
    %v260 = vmul.f32 0.5, %v259
    %v261 = vsub.f32 1.5, %v260
    %v262 = vmul.f32 %v257, %v261
    %v263 = vmul.f32 %v253, %v262
    %vm264 = vcmp.eq.f32.partialorder %v253, inf
    %v265 = vsel %vm264, %v253, %v263
    %vm266 = vcmp.eq.f32.partialorder %v253, 0.0
    %v267 = vand.u32 %v253, 2147483648
    %v268 = vsel %vm266, %v267, %v265
    %v269 = vrsqrt.pop %v254
    %v270 = vmul.f32 %v269, %v254
    %v271 = vmul.f32 %v270, %v269
    %v272 = vmul.f32 0.5, %v271
    %v273 = vsub.f32 1.5, %v272
    %v274 = vmul.f32 %v269, %v273
    %v275 = vmul.f32 %v254, %v274
    %vm276 = vcmp.eq.f32.partialorder %v254, inf
    %v277 = vsel %vm276, %v254, %v275
    %vm278 = vcmp.eq.f32.partialorder %v254, 0.0
    %v279 = vand.u32 %v254, 2147483648
    %v280 = vsel %vm278, %v279, %v277
    %v281 = vrsqrt.pop %v255
    %v282 = vmul.f32 %v281, %v255
    %v283 = vmul.f32 %v282, %v281
    %v284 = vmul.f32 0.5, %v283
    %v285 = vsub.f32 1.5, %v284
    %v286 = vmul.f32 %v281, %v285
    %v287 = vmul.f32 %v255, %v286
    %vm288 = vcmp.eq.f32.partialorder %v255, inf
    %v289 = vsel %vm288, %v255, %v287
    %vm290 = vcmp.eq.f32.partialorder %v255, 0.0
    %v291 = vand.u32 %v255, 2147483648
    %v292 = vsel %vm290, %v291, %v289
    %v293 = vrsqrt.pop %v256
    %v294 = vmul.f32 %v293, %v256
    %v295 = vmul.f32 %v294, %v293
    %v296 = vmul.f32 0.5, %v295
    %v297 = vsub.f32 1.5, %v296
    %v298 = vmul.f32 %v293, %v297
    %v299 = vmul.f32 %v256, %v298
    %vm300 = vcmp.eq.f32.partialorder %v256, inf
    %v301 = vsel %vm300, %v256, %v299
    %vm302 = vcmp.eq.f32.partialorder %v256, 0.0
    %v303 = vand.u32 %v256, 2147483648
    %v304 = vsel %vm302, %v303, %v301
    %v305 = vmul.f32 %v268, %v249
    %v306 = vmul.f32 %v280, %v250
    %v307 = vmul.f32 %v292, %v251
    %v308 = vmul.f32 %v304, %v252
    %vm309 = vcmp.ge.f32.partialorder %v217, 0.0
    %vm310 = vcmp.ge.f32.partialorder %v218, 0.0
    %vm311 = vcmp.ge.f32.partialorder %v219, 0.0
    %vm312 = vcmp.ge.f32.partialorder %v220, 0.0
    %v313 = vsub.f32 3.1415927, %v305
    %v314 = vsub.f32 3.1415927, %v306
    %v315 = vsub.f32 3.1415927, %v307
    %v316 = vsub.f32 3.1415927, %v308
    %v317 = vsel %vm309, %v305, %v313
    %v318 = vsel %vm310, %v306, %v314
    %v319 = vsel %vm311, %v307, %v315
    %v320 = vsel %vm312, %v308, %v316
    %v321 = vmul.f32 %v317, 0.5
    %v322 = vmul.f32 %v318, 0.5
    %v323 = vmul.f32 %v319, 0.5
    %v324 = vmul.f32 %v320, 0.5
    %v325 = vmul.f32 %v321, %v317
    %v326 = vmul.f32 %v322, %v318
    %v327 = vmul.f32 %v323, %v319
    %v328 = vmul.f32 %v324, %v320
    %v329 = vld [vmem:[#allocation7] sm:$0x1]
    %v330 = vadd.f32 %v325, %v326
    %v331 = vadd.f32 %v330, %v327
    %v332 = vadd.f32 %v331, %v328
    %v333 = vrot.slane %v332, 4
    %v334 = vadd.f32 %v332, %v333
    %v335 = vrot.slane %v334, 2
    %v336 = vadd.f32 %v334, %v335
    %v337 = vrot.slane %v336, 1
    %v338 = vadd.f32 %v336, %v337
    %v339 = vadd.f32 %v329, %v338
    %340 = vst [vmem:[#allocation7] sm:$0x1] %v339
    // Predicated region
    $region26: #{tpu_custom_call.1} parent=1 // pred_check
      %p341 = pneg %p53
    $region27: #{tpu_custom_call.1} parent=1 // pred_check_branch
      %343 = sbr.rel (%p341) target = $region29
    $region28: #{tpu_custom_call.1} parent=1 // pred_region
      %v344 = vld [vmem:[#allocation7] sm:$0x1]
      %v345 = vld [vmem:[%s2] sm:$0x1]
      %v346 = vmul.f32 %v344, %v345
      %347 = vst [vmem:[#allocation7] sm:$0x1] %v346
    $region29: #{tpu_custom_call.1} parent=1 // pred_fallthru
      _
    // Predicated region
    $region30: #{tpu_custom_call.1} parent=1 // pred_check
      _
    $region31: #{tpu_custom_call.1} parent=1 // pred_check_branch
      %349 = sbr.rel (0) target = $region33
    $region32: #{tpu_custom_call.1} parent=1 // pred_region
      %351 = vsyncadd [#allocation4], 0
      %s353 = sshll.u32 [#allocation7], 4
      %s354 = int_to_ptr.vmem [resolvable:$true] %s353
      %s355 = sshll.u32 %s3, 4
      %s356 = int_to_ptr.hbm [resolvable:$true] %s355
      %358 = dma.vmem_to_hbm [thread:$0]  %s354, 16, %s356, [#allocation4]
    $region33: #{tpu_custom_call.1} parent=1 // pred_fallthru
      _
    // Predicated region
    $region34: #{tpu_custom_call.1} parent=1 // pred_check
      _
    $region35: #{tpu_custom_call.1} parent=1 // pred_check_branch
      %360 = sbr.rel (0) target = $region37
    $region36: #{tpu_custom_call.1} parent=1 // pred_region
      %362 = dma.done [#allocation4], 16
    $region37: #{tpu_custom_call.1} parent=1 // pred_fallthru
      _
    %363 = vsyncpa [#allocation3], 1
    %364 = vsyncpa [#allocation6], 1
    %365 = vsyncpa [#allocation4], 1

</llo_original>
